<compile_context>
chip_gen: v7x
topology: tpu7x:2x2x1
jax: 0.10.0
libtpu: 0.0.40
codegen_flags: <defaults>
</compile_context>

<pallas_src>
import jax
import jax.numpy as jnp
from jax.experimental import pallas as pl
from jax.experimental.pallas import tpu as pltpu


def _round_up(a, m):
    return ((a + m - 1) // m) * m


# --------------------------------------------------------------------------
# Kernel bodies
# --------------------------------------------------------------------------
def _linear_tanh_single_k_kernel(x_ref, w_ref, o_ref):
    # Whole reduction in one step: no accumulator, no zero-init, no RMW.
    o_ref[...] = jnp.tanh(
        jnp.dot(x_ref[...], w_ref[...], preferred_element_type=jnp.float32)
    ).astype(o_ref.dtype)


def _linear_tanh_acc_out_kernel(x_ref, w_ref, o_ref):
    # Multi-step reduction, f32 output: accumulate directly into o_ref.
    k = pl.program_id(2)

    @pl.when(k == 0)
    def _():
        o_ref[...] = jnp.zeros_like(o_ref)

    o_ref[...] += jnp.dot(
        x_ref[...], w_ref[...], preferred_element_type=jnp.float32
    )

    @pl.when(k == pl.num_programs(2) - 1)
    def _():
        o_ref[...] = jnp.tanh(o_ref[...])


def _linear_tanh_acc_scratch_kernel(x_ref, w_ref, o_ref, acc_ref):
    # Multi-step reduction, non-f32 output: f32 scratch accumulator.
    k = pl.program_id(2)

    @pl.when(k == 0)
    def _():
        acc_ref[...] = jnp.zeros_like(acc_ref)

    acc_ref[...] += jnp.dot(
        x_ref[...], w_ref[...], preferred_element_type=jnp.float32
    )

    @pl.when(k == pl.num_programs(2) - 1)
    def _():
        o_ref[...] = jnp.tanh(acc_ref[...]).astype(o_ref.dtype)


# --------------------------------------------------------------------------
# Wrapper
# --------------------------------------------------------------------------
def layer_forward(x, w_t, *, block_b=1024, block_n=512, block_k=1024,
                  compute_dtype=jnp.bfloat16):
    """tanh(x @ w_t) where x: (B, in_size), w_t: (in_size, out_size)."""
    B, K = x.shape
    K_w, N = w_t.shape
    assert K == K_w, "in_size mismatch between x and w_t"
    out_dtype = x.dtype
    out_itemsize = jnp.dtype(out_dtype).itemsize

    # MXU operands in compute_dtype (bf16 by default); accumulation stays f32.
    if compute_dtype is not None and x.dtype != compute_dtype:
        x = x.astype(compute_dtype)
    if compute_dtype is not None and w_t.dtype != compute_dtype:
        w_t = w_t.astype(compute_dtype)
    itemsize = jnp.dtype(x.dtype).itemsize
    sub = 16 if (itemsize == 2 or out_itemsize == 2) else 8  # sublane packing

    # Align user-provided block sizes to hardware granularity.
    block_b = _round_up(max(block_b, sub), sub)
    block_n = _round_up(max(block_n, 128), 128)
    block_k = _round_up(max(block_k, 128), 128)

    # Full-extent block when the dim fits (exempt from the (8,128) rule) ->
    # no padding needed; otherwise tile with an aligned block and pad.
    tb = B if B <= block_b else block_b
    tn = N if N <= block_n else block_n
    tk = K if K <= block_k else block_k

    Bp = _round_up(B, tb)
    Kp = _round_up(K, tk)
    Np = _round_up(N, tn)

    # Zero K-padding contributes 0 to the dot product -> exact; padded B/N
    # rows/cols produce tanh(0)=0 and are sliced off afterwards.
    if (Bp, Kp) != (B, K):
        x = jnp.pad(x, ((0, Bp - B), (0, Kp - K)))
    if (Kp, Np) != (K, N):
        w_t = jnp.pad(w_t, ((0, Kp - K), (0, Np - N)))

    bt, nt, kt = Bp // tb, Np // tn, Kp // tk

    # v7x has 2 TensorCores: make sure there are >=2 parallel output blocks
    # when the shapes allow it (no-op for tiny demo shapes and on v5e/v6e).
    if bt * nt < 2:
        if tb % 2 == 0 and (tb // 2) % sub == 0 and Bp % (tb // 2) == 0:
            tb //= 2
        elif tn % 2 == 0 and (tn // 2) % 128 == 0 and Np % (tn // 2) == 0:
            tn //= 2
        bt, nt = Bp // tb, Np // tn

    # VMEM budget: double-buffered x/w tiles + output tile(s) + headroom,
    # capped at 48 MiB so v7x (64 MiB physical) keeps compiler headroom.
    buf_bytes = 2 * (tb * tk + tk * tn) * itemsize + 2 * tb * tn * out_itemsize
    if kt > 1 and out_dtype != jnp.float32:
        buf_bytes += tb * tn * 4  # scratch accumulator
    vmem_limit = int(min(max(buf_bytes + (4 << 20), 8 << 20), 48 << 20))

    cost = pl.CostEstimate(
        flops=2 * Bp * Kp * Np,
        transcendentals=Bp * Np,
        bytes_accessed=(Bp * Kp + Kp * Np) * itemsize + Bp * Np * out_itemsize,
    )

    if kt == 1:
        # ---- Single reduction step: no accumulator at all. ----------------
        # Pick the grid order that minimizes HBM re-reads: with the batch axis
        # innermost the weight block index is constant across it, so the
        # (resident) weight is DMA'd once; otherwise keep x resident per row.
        x_bytes = Bp * Kp * itemsize
        w_bytes = Kp * Np * itemsize
        if x_bytes * (nt - 1) <= w_bytes * (bt - 1):
            grid = (nt, bt)  # batch innermost -> weight streamed once per j
            x_spec = pl.BlockSpec((tb, tk), lambda j, i: (i, 0))
            w_spec = pl.BlockSpec((tk, tn), lambda j, i: (0, j))
            o_spec = pl.BlockSpec((tb, tn), lambda j, i: (i, j))
        else:
            grid = (bt, nt)  # N innermost -> x streamed once per i
            x_spec = pl.BlockSpec((tb, tk), lambda i, j: (i, 0))
            w_spec = pl.BlockSpec((tk, tn), lambda i, j: (0, j))
            o_spec = pl.BlockSpec((tb, tn), lambda i, j: (i, j))
        kernel = _linear_tanh_single_k_kernel
        scratch_shapes = []
        dim_sem = ("parallel", "parallel")
    else:
        # ---- Multi-step reduction: K is the last (arbitrary) grid axis. ----
        grid = (bt, nt, kt)
        x_spec = pl.BlockSpec((tb, tk), lambda i, j, k: (i, k))
        w_spec = pl.BlockSpec((tk, tn), lambda i, j, k: (k, j))
        o_spec = pl.BlockSpec((tb, tn), lambda i, j, k: (i, j))
        if out_dtype == jnp.float32:
            kernel = _linear_tanh_acc_out_kernel
            scratch_shapes = []
        else:
            kernel = _linear_tanh_acc_scratch_kernel
            scratch_shapes = [pltpu.VMEM((tb, tn), jnp.float32)]
        dim_sem = ("parallel", "parallel", "arbitrary")

    out = pl.pallas_call(
        kernel,
        out_shape=jax.ShapeDtypeStruct((Bp, Np), out_dtype),
        grid_spec=pltpu.PrefetchScalarGridSpec(
            num_scalar_prefetch=0,
            grid=grid,
            in_specs=[x_spec, w_spec],
            out_specs=o_spec,
            scratch_shapes=scratch_shapes,
        ),
        compiler_params=pltpu.CompilerParams(
            dimension_semantics=dim_sem,
            vmem_limit_bytes=vmem_limit,
        ),
        cost_estimate=cost,
    )(x, w_t)

    if (Bp, Np) != (B, N):
        out = out[:B, :N]
    return out


if __name__ == "__main__":
    key = jax.random.PRNGKey(0)
    k_x, k_w, k_x2, k_w2 = jax.random.split(key, 4)

    # --- Small shapes consistent with the module's forward: inp (batch, in) ---
    batch, in_size, out_size = 8, 32, 16
    x = jax.random.normal(k_x, (batch, in_size), dtype=jnp.float32)
    # nn.Linear weight is (out_size, in_size); the kernel takes it transposed.
    bound = 1.0 / (in_size ** 0.5)
    w = jax.random.uniform(
        k_w, (out_size, in_size), dtype=jnp.float32, minval=-bound, maxval=bound
    )
    w_t = jnp.transpose(w)  # (in_size, out_size)
    ref = jnp.tanh(x @ w_t)

    # f32 operands: tight match against the reference.
    out_f32 = jax.block_until_ready(layer_forward(x, w_t, compute_dtype=None))
    assert out_f32.shape == (batch, out_size)
    assert jnp.allclose(out_f32, ref, atol=1e-5, rtol=1e-5)

    # Default bf16 MXU operands (f32 accumulation): looser tolerance.
    out_bf16 = jax.block_until_ready(layer_forward(x, w_t))
    assert jnp.allclose(out_bf16, ref, atol=2e-2, rtol=2e-2)

    # --- Larger case: full-extent tiles, no padding, weight resident ----------
    B2, K2, N2 = 256, 512, 384
    x2 = jax.random.normal(k_x2, (B2, K2), dtype=jnp.float32)
    w2_t = jax.random.uniform(
        k_w2, (K2, N2), dtype=jnp.float32,
        minval=-1.0 / (K2 ** 0.5), maxval=1.0 / (K2 ** 0.5),
    )
    ref2 = jnp.tanh(x2 @ w2_t)
    out2 = jax.block_until_ready(layer_forward(x2, w2_t))
    assert out2.shape == (B2, N2)
    assert jnp.allclose(out2, ref2, atol=2e-2, rtol=2e-2)

    # --- Multi-K reduction path, f32 accumulate-into-output kernel ------------
    out3 = jax.block_until_ready(
        layer_forward(x2, w2_t, block_k=256, compute_dtype=None)
    )
    assert jnp.allclose(out3, ref2, atol=1e-4, rtol=1e-4)

    # --- Multi-K reduction path, bf16 output -> scratch-accumulator kernel ----
    out4 = jax.block_until_ready(
        layer_forward(
            x2.astype(jnp.bfloat16), w2_t.astype(jnp.bfloat16), block_k=256
        )
    )
    assert jnp.allclose(out4.astype(jnp.float32), ref2, atol=3e-2, rtol=3e-2)

    print("KERNEL_OK")
</pallas_src>

<mosaic_0001>
module attributes {stable_mosaic.version = 11 : i64} {
  func.func @_linear_tanh_single_k_kernel(%arg0: i32, %arg1: i32, %arg2: memref<8x32xf32, #tpu.memory_space<vmem>>, %arg3: memref<32x16xf32, #tpu.memory_space<vmem>>, %arg4: memref<8x16xf32, #tpu.memory_space<vmem>>) attributes {dimension_semantics = [#tpu.dimension_semantics<parallel>, #tpu.dimension_semantics<parallel>], iteration_bounds = array<i64: 1, 1>, scalar_prefetch = 0 : i64, scratch_operands = 0 : i64, tpu.core_type = #tpu.core_type<tc>, window_params = [{transform_indices = @transform_0, window_bounds = array<i64: 8, 32>}, {transform_indices = @transform_1, window_bounds = array<i64: 32, 16>}, {transform_indices = @transform_2, window_bounds = array<i64: 8, 16>}]} {
    %c0 = arith.constant 0 : index
    %c0_0 = arith.constant 0 : index
    %0 = vector.load %arg2[%c0, %c0_0] : memref<8x32xf32, #tpu.memory_space<vmem>>, vector<8x32xf32>
    %c0_1 = arith.constant 0 : index
    %c0_2 = arith.constant 0 : index
    %1 = vector.load %arg3[%c0_1, %c0_2] : memref<32x16xf32, #tpu.memory_space<vmem>>, vector<32x16xf32>
    %cst = arith.constant dense<0.000000e+00> : vector<8x16xf32>
    %2 = tpu.matmul %0, %1, %cst {dimension_numbers = #tpu.dot_dimension_numbers<[1], [0], [0], [1], [0, 0, 1, 1], [], []>} : vector<8x32xf32>, vector<32x16xf32>, vector<8x16xf32> -> vector<8x16xf32>
    %3 = math.tanh %2 : vector<8x16xf32>
    %c0_3 = arith.constant 0 : index
    %c0_4 = arith.constant 0 : index
    %4 = vector.load %arg4[%c0_3, %c0_4] : memref<8x16xf32, #tpu.memory_space<vmem>>, vector<8x16xf32>
    tpu.vector_store %arg4[%c0_3, %c0_4], %3 {strides = array<i32>} : memref<8x16xf32, #tpu.memory_space<vmem>>, vector<8x16xf32>,
    return
  }
  func.func @transform_0(%arg0: i32, %arg1: i32) -> (i32, i32) {
    %c0_i32 = arith.constant 0 : i32
    %c0_i32_0 = arith.constant 0 : i32
    return %arg1, %c0_i32 : i32, i32
  }
  func.func @transform_1(%arg0: i32, %arg1: i32) -> (i32, i32) {
    %c0_i32 = arith.constant 0 : i32
    %c0_i32_0 = arith.constant 0 : i32
    return %c0_i32, %arg0 : i32, i32
  }
  func.func @transform_2(%arg0: i32, %arg1: i32) -> (i32, i32) {
    %c0_i32 = arith.constant 0 : i32
    return %arg1, %arg0 : i32, i32
  }
}

</mosaic_0001>

<llo_original>
// kernel: tpu_custom_call.1
$region0: #{tpu_custom_call.1}
  #allocation0 [shape = 'u32[]', space=smem, size = 0x4, offset = 0x4, fixed_abs, tag = 'smem constant byte address 0x4 - core index']
  #allocation1 [shape = 'u32[144,128]{1,0:T(1,128)}', space=vmem, size = 0x12000, scoped, tag = 'internal scratch']
  %s0 = inlined_call_operand.vmem [shape: f32[8,32], index: 0, kind: input, shape index: {}]
  %s1 = inlined_call_operand.vmem [shape: f32[32,16], index: 1, kind: input, shape index: {}]
  %s2 = inlined_call_operand.hbm [shape: f32[8,16], index: 2, kind: output, shape index: {}]
  %s3 = sld [smem:[#allocation0]]
  $region18: #{tpu_custom_call.1} parent=0
    _
  %s5 = ssub.s32 1, %s3
  %s6 = scalar_select 0, %s5, %s3
  $region1: #{tpu_custom_call.1} parent=0
    #allocation2 [shape = 'u8[4096]{0}', space=vmem, size = 0x1000, scoped, tag = 'output window, operand 0, single buffered']
    #allocation3 [shape = 's32[1]{0}', space=sflag, size = 0x4, scoped, tag = 'scoped memory for tpu_custom_call.1']
    %7 = vsyncpa [#allocation3], 0
    // Predicated region
    $region2: #{tpu_custom_call.1} parent=1 // pred_check
      _
    $region3: #{tpu_custom_call.1} parent=1 // pred_check_branch
      %9 = sbr.rel (0) target = $region5
    $region4: #{tpu_custom_call.1} parent=1 // pred_region
      _
    $region5: #{tpu_custom_call.1} parent=1 // pred_fallthru
      _
    // Predicated region
    $region6: #{tpu_custom_call.1} parent=1 // pred_check
      _
    $region7: #{tpu_custom_call.1} parent=1 // pred_check_branch
      %11 = sbr.rel (0) target = $region9
    $region8: #{tpu_custom_call.1} parent=1 // pred_region
      _
    $region9: #{tpu_custom_call.1} parent=1 // pred_fallthru
      _
    %v12 = vld [vmem:[%s0] sm:$0xff]
    %v13 = vld [vmem:[%s1] sm:$0xff]
    %v14 = vld [vmem:[%s1 + $0x8] sm:$0xff]
    %v15 = vld [vmem:[%s1 + $0x10] sm:$0xff]
    %v16 = vld [vmem:[%s1 + $0x18] sm:$0xff]
    %vm17 = vcmask 261120
    %v19 = vsel %vm17, %v12, 0
    %21 = vmatprep.subr.mxu0 0.0
    %22 = vmatpush1.msra.mxu0 %v13
    %23 = vmatprep.subr.mxu0 0.0
    %24 = vmatpush1.msra.mxu0 %v14
    %25 = vmatprep.subr.mxu0 0.0
    %26 = vmatpush1.msra.mxu0 %v15
    %27 = vmatprep.subr.mxu0 0.0
    %28 = vmatpush1.msra.mxu0 %v16
    %29 = vmatprep.subr.mxu0 0.0
    %30 = vmatpush1.msra.mxu0 0.0
    %31 = vmatprep.subr.mxu0 0.0
    %32 = vmatpush1.msra.mxu0 0.0
    %33 = vmatprep.subr.mxu0 0.0
    %34 = vmatpush1.msra.mxu0 0.0
    %35 = vmatprep.subr.mxu0 0.0
    %36 = vmatpush1.msra.mxu0 0.0
    %37 = vmatprep.subr.mxu0 0.0
    %38 = vmatpush1.msra.mxu0 0.0
    %39 = vmatprep.subr.mxu0 0.0
    %40 = vmatpush1.msra.mxu0 0.0
    %41 = vmatprep.subr.mxu0 0.0
    %42 = vmatpush1.msra.mxu0 0.0
    %43 = vmatprep.subr.mxu0 0.0
    %44 = vmatpush1.msra.mxu0 0.0
    %45 = vmatprep.subr.mxu0 0.0
    %46 = vmatpush1.msra.mxu0 0.0
    %47 = vmatprep.subr.mxu0 0.0
    %48 = vmatpush1.msra.mxu0 0.0
    %49 = vmatprep.subr.mxu0 0.0
    %50 = vmatpush1.msra.mxu0 0.0
    %51 = vmatprep.subr.mxu0 0.0
    %52 = vmatpush1.msra.mxu0 0.0
    %53 = vmatprep.subr.mxu0 0.0
    %54 = vmatpush1.msra.mxu0 0.0
    %55 = vmatprep.subr.mxu0 0.0
    %56 = vmatpush1.msra.mxu0 0.0
    %57 = vmatprep.subr.mxu0 0.0
    %58 = vmatpush1.msra.mxu0 0.0
    %59 = vmatprep.subr.mxu0 0.0
    %60 = vmatpush1.msra.mxu0 0.0
    %61 = vmatprep.subr.mxu0 0.0
    %62 = vmatpush1.msra.mxu0 0.0
    %63 = vmatprep.subr.mxu0 0.0
    %64 = vmatpush1.msra.mxu0 0.0
    %65 = vmatprep.subr.mxu0 0.0
    %66 = vmatpush1.msra.mxu0 0.0
    %67 = vmatprep.subr.mxu0 0.0
    %68 = vmatpush1.msra.mxu0 0.0
    %69 = vmatprep.subr.mxu0 0.0
    %70 = vmatpush1.msra.mxu0 0.0
    %71 = vmatprep.subr.mxu0 0.0
    %72 = vmatpush1.msra.mxu0 0.0
    %73 = vmatprep.subr.mxu0 0.0
    %74 = vmatpush1.msra.mxu0 0.0
    %75 = vmatprep.subr.mxu0 0.0
    %76 = vmatpush1.msra.mxu0 0.0
    %77 = vmatprep.subr.mxu0 0.0
    %78 = vmatpush1.msra.mxu0 0.0
    %79 = vmatprep.subr.mxu0 0.0
    %80 = vmatpush1.msra.mxu0 0.0
    %81 = vmatprep.subr.mxu0 0.0
    %82 = vmatpush1.msra.mxu0 0.0
    %83 = vmatprep.subr.mxu0 0.0
    %84 = vmatpush1.msra.mxu0 0.0
    %85 = vmatprep.mubr.f32.mxu0 0.0
    %86 = vmatmul.mubr.f32.gmra.mrb[0].mxu0 %v19
    %v87 = vpop.f32.mrb[0].mxu0
    %v88 = vadd.f32 0.0, %v87
    %v89 = vpop.f32.mrb[0].mxu0
    %90 = vdwg.mxu0
    %v91 = vtanh.pop %v88
    %vm92 = vcmask 130048
    %93 = vst.msk [vmem:[#allocation2] sm:$0xff] %vm92, %v91
    // Predicated region
    $region10: #{tpu_custom_call.1} parent=1 // pred_check
      _
    $region11: #{tpu_custom_call.1} parent=1 // pred_check_branch
      %95 = sbr.rel (0) target = $region13
    $region12: #{tpu_custom_call.1} parent=1 // pred_region
      %s97 = ssub.s32 128, 128
      %98 = vsyncadd [#allocation3], %s97
      %s100 = sshll.u32 [#allocation2], 4
      %s101 = int_to_ptr.vmem [resolvable:$true] %s100
      %103 = dma.vmem_to_hbm [thread:$0]  %s101, 128, %s2, [#allocation3]
    $region13: #{tpu_custom_call.1} parent=1 // pred_fallthru
      _
    // Predicated region
    $region14: #{tpu_custom_call.1} parent=1 // pred_check
      _
    $region15: #{tpu_custom_call.1} parent=1 // pred_check_branch
      %105 = sbr.rel (0) target = $region17
    $region16: #{tpu_custom_call.1} parent=1 // pred_region
      %106 = dma.done [#allocation3], 128
    $region17: #{tpu_custom_call.1} parent=1 // pred_fallthru
      _
    %107 = vsyncpa [#allocation3], 1

</llo_original>
